<compile_context>
chip_gen: v7x
topology: tpu7x:2x2x1
jax: 0.10.0
libtpu: 0.0.40
codegen_flags: <defaults>
</compile_context>

<pallas_src>
import jax
import jax.numpy as jnp
from jax.experimental import pallas as pl
from jax.experimental.pallas import tpu as pltpu


def _round_up(x, m):
    return ((x + m - 1) // m) * m


def sender_kernel(x_ref, w12_ref, b12_ref, w3_ref, b3_ref, out_ref):
    # x_ref:   (bm, D)        f32   (D = n_features + n_intentions)
    # w12_ref: (D, 2*H)       bf16  (blockdiag(W1, W2), pre-transposed, padded)
    # b12_ref: (1, 2*H)       f32   (concat(b1, b2), padded)
    # w3_ref:  (2*H, H)       bf16  (W3, pre-transposed, padded)
    # b3_ref:  (1, H)         f32
    # out_ref: (bm, H)        f32
    x_bf = x_ref[...].astype(jnp.bfloat16)                      # VPU cast

    # concat([fe, ie]) = relu(x @ blockdiag(W1,W2).T + [b1,b2])  (one MXU dot)
    joint = jnp.dot(x_bf, w12_ref[...],
                    preferred_element_type=jnp.float32) + b12_ref[...]
    joint = jnp.maximum(joint, 0.0)                              # relu on VPU (f32)

    # fc3: one (bm, 2H) x (2H, H) MXU dot, bf16 operands / f32 accumulation.
    h = jnp.dot(joint.astype(jnp.bfloat16), w3_ref[...],
                preferred_element_type=jnp.float32) + b3_ref[...]

    out_ref[...] = jnp.tanh(h).astype(out_ref.dtype)             # tanh on EUP


def sender_forward(x, w1, b1, w2, b2, w3, b3, *, block_m=512):
    """x: (B, n_features + n_intentions)
    w1: (n_hidden, n_features),   b1: (n_hidden,)
    w2: (n_hidden, n_intentions), b2: (n_hidden,)
    w3: (n_hidden, 2*n_hidden),   b3: (n_hidden,)
    returns (B, n_hidden) float32."""
    B, d_in = x.shape
    n_hidden, n_features = w1.shape
    n_intentions = w2.shape[1]
    assert d_in == n_features + n_intentions
    assert w3.shape == (n_hidden, 2 * n_hidden)

    f32 = jnp.float32
    D = d_in
    H = _round_up(n_hidden, 128)          # lane-dense hidden width

    # --- one-time wrapper-side weight prep (tiny, static) -------------------
    # Fused fc1+fc2: block-diagonal, (in, out) layout, zero-padded to 2*H lanes.
    w12_t = jnp.zeros((D, 2 * H), f32)
    w12_t = w12_t.at[:n_features, :n_hidden].set(w1.T.astype(f32))
    w12_t = w12_t.at[n_features:, H:H + n_hidden].set(w2.T.astype(f32))
    b12 = jnp.zeros((1, 2 * H), f32)
    b12 = b12.at[:, :n_hidden].set(b1.astype(f32))
    b12 = b12.at[:, H:H + n_hidden].set(b2.astype(f32))

    # fc3: (in, out) layout, rows aligned with the padded [fe | 0 | ie | 0] joint.
    w3_t = jnp.zeros((2 * H, H), f32)
    w3_t = w3_t.at[:n_hidden, :n_hidden].set(w3[:, :n_hidden].T.astype(f32))
    w3_t = w3_t.at[H:H + n_hidden, :n_hidden].set(w3[:, n_hidden:].T.astype(f32))
    b3p = jnp.zeros((1, H), f32)
    b3p = b3p.at[:, :n_hidden].set(b3.astype(f32))

    # bf16 MXU operands (halves weight DMA bytes; f32 accumulation in-kernel).
    w12_t = w12_t.astype(jnp.bfloat16)
    w3_t = w3_t.astype(jnp.bfloat16)

    # --- batch row-blocking --------------------------------------------------
    # >= 2 grid steps when possible so the "parallel" axis shards across both
    # v7x TensorCores; big blocks (multiple of 8 sublanes) amortize the
    # ~0.35us per-step overhead.  No padding: cdiv grid + masked ragged block.
    if B <= 8:
        bm = B
    else:
        bm = min(block_m, _round_up(pl.cdiv(B, 2), 8))
    grid_m = pl.cdiv(B, bm)

    const = lambda i: (0, 0)   # weights/biases: same block every step (resident)

    out = pl.pallas_call(
        sender_kernel,
        out_shape=jax.ShapeDtypeStruct((B, H), jnp.float32),
        grid_spec=pltpu.PrefetchScalarGridSpec(
            num_scalar_prefetch=0,
            grid=(grid_m,),
            in_specs=[
                pl.BlockSpec((bm, D), lambda i: (i, 0)),
                pl.BlockSpec((D, 2 * H), const),
                pl.BlockSpec((1, 2 * H), const),
                pl.BlockSpec((2 * H, H), const),
                pl.BlockSpec((1, H), const),
            ],
            out_specs=pl.BlockSpec((bm, H), lambda i: (i, 0)),
        ),
        compiler_params=pltpu.CompilerParams(
            # Batch-block axis is independent -> megacore-shardable.
            dimension_semantics=("parallel",),
        ),
    )(x.astype(f32), w12_t, b12, w3_t, b3p)

    return out if H == n_hidden else out[:, :n_hidden]


if __name__ == "__main__":
    # Small shapes consistent with Sender.forward.
    B = 8
    n_features = 16
    n_intentions = 8
    n_hidden = 32

    key = jax.random.PRNGKey(0)
    kx, k1w, k1b, k2w, k2b, k3w, k3b = jax.random.split(key, 7)

    x = jax.random.normal(kx, (B, n_features + n_intentions), dtype=jnp.float32)
    # Deterministic synthetic parameters (PyTorch Linear shape convention).
    w1 = jax.random.normal(k1w, (n_hidden, n_features), dtype=jnp.float32) * 0.1
    b1 = jax.random.normal(k1b, (n_hidden,), dtype=jnp.float32) * 0.1
    w2 = jax.random.normal(k2w, (n_hidden, n_intentions), dtype=jnp.float32) * 0.1
    b2 = jax.random.normal(k2b, (n_hidden,), dtype=jnp.float32) * 0.1
    w3 = jax.random.normal(k3w, (n_hidden, 2 * n_hidden), dtype=jnp.float32) * 0.1
    b3 = jax.random.normal(k3b, (n_hidden,), dtype=jnp.float32) * 0.1

    out = sender_forward(x, w1, b1, w2, b2, w3, b3)
    out = jax.block_until_ready(out)

    # Pure-JAX f32 reference (same math as PyTorch Sender.forward).
    feats_ref = x[:, :n_features]
    intents_ref = x[:, n_features:]
    fe_ref = jax.nn.relu(feats_ref @ w1.T + b1)
    ie_ref = jax.nn.relu(intents_ref @ w2.T + b2)
    joint_ref = jnp.concatenate([fe_ref, ie_ref], axis=1)
    out_ref = jnp.tanh(joint_ref @ w3.T + b3)

    assert out.shape == (B, n_hidden)
    # Tolerance relaxed for bf16 MXU operands (f32 accumulation).
    assert jnp.allclose(out, out_ref, atol=2e-2, rtol=2e-2)

    print("KERNEL_OK")
</pallas_src>

<mosaic_0001>
module attributes {stable_mosaic.version = 11 : i64} {
  func.func @sender_kernel(%arg0: i32, %arg1: memref<8x24xf32, #tpu.memory_space<vmem>>, %arg2: memref<24x256xbf16, #tpu.memory_space<vmem>>, %arg3: memref<1x256xf32, #tpu.memory_space<vmem>>, %arg4: memref<256x128xbf16, #tpu.memory_space<vmem>>, %arg5: memref<1x128xf32, #tpu.memory_space<vmem>>, %arg6: memref<8x128xf32, #tpu.memory_space<vmem>>) attributes {dimension_semantics = [#tpu.dimension_semantics<parallel>], iteration_bounds = array<i64: 1>, scalar_prefetch = 0 : i64, scratch_operands = 0 : i64, tpu.core_type = #tpu.core_type<tc>, window_params = [{transform_indices = @transform_0, window_bounds = array<i64: 8, 24>}, {pipeline_mode = #tpu.pipeline_mode<synchronous>, transform_indices = @transform_1, window_bounds = array<i64: 24, 256>}, {pipeline_mode = #tpu.pipeline_mode<synchronous>, transform_indices = @transform_2, window_bounds = array<i64: 1, 256>}, {pipeline_mode = #tpu.pipeline_mode<synchronous>, transform_indices = @transform_3, window_bounds = array<i64: 256, 128>}, {pipeline_mode = #tpu.pipeline_mode<synchronous>, transform_indices = @transform_4, window_bounds = array<i64: 1, 128>}, {transform_indices = @transform_5, window_bounds = array<i64: 8, 128>}]} {
    %c0 = arith.constant 0 : index
    %c0_0 = arith.constant 0 : index
    %0 = vector.load %arg1[%c0, %c0_0] : memref<8x24xf32, #tpu.memory_space<vmem>>, vector<8x24xf32>
    %1 = arith.truncf %0 : vector<8x24xf32> to vector<8x24xbf16>
    %c0_1 = arith.constant 0 : index
    %c0_2 = arith.constant 0 : index
    %2 = vector.load %arg2[%c0_1, %c0_2] : memref<24x256xbf16, #tpu.memory_space<vmem>>, vector<24x256xbf16>
    %cst = arith.constant dense<0.000000e+00> : vector<8x256xf32>
    %3 = tpu.matmul %1, %2, %cst {dimension_numbers = #tpu.dot_dimension_numbers<[1], [0], [0], [1], [0, 0, 1, 1], [], []>} : vector<8x24xbf16>, vector<24x256xbf16>, vector<8x256xf32> -> vector<8x256xf32>
    %c0_3 = arith.constant 0 : index
    %c0_4 = arith.constant 0 : index
    %4 = vector.load %arg3[%c0_3, %c0_4] : memref<1x256xf32, #tpu.memory_space<vmem>>, vector<1x256xf32>
    %5 = vector.broadcast %4 : vector<1x256xf32> to vector<8x256xf32>
    %6 = arith.addf %3, %5 : vector<8x256xf32>
    %cst_5 = arith.constant 0.000000e+00 : f32
    %7 = vector.broadcast %cst_5 : f32 to vector<8x256xf32>
    %8 = arith.maximumf %6, %7 : vector<8x256xf32>
    %9 = arith.truncf %8 : vector<8x256xf32> to vector<8x256xbf16>
    %c0_6 = arith.constant 0 : index
    %c0_7 = arith.constant 0 : index
    %10 = vector.load %arg4[%c0_6, %c0_7] : memref<256x128xbf16, #tpu.memory_space<vmem>>, vector<256x128xbf16>
    %cst_8 = arith.constant dense<0.000000e+00> : vector<8x128xf32>
    %11 = tpu.matmul %9, %10, %cst_8 {dimension_numbers = #tpu.dot_dimension_numbers<[1], [0], [0], [1], [0, 0, 1, 1], [], []>} : vector<8x256xbf16>, vector<256x128xbf16>, vector<8x128xf32> -> vector<8x128xf32>
    %c0_9 = arith.constant 0 : index
    %c0_10 = arith.constant 0 : index
    %12 = vector.load %arg5[%c0_9, %c0_10] : memref<1x128xf32, #tpu.memory_space<vmem>>, vector<1x128xf32>
    %13 = vector.broadcast %12 : vector<1x128xf32> to vector<8x128xf32>
    %14 = arith.addf %11, %13 : vector<8x128xf32>
    %15 = math.tanh %14 : vector<8x128xf32>
    %c0_11 = arith.constant 0 : index
    %c0_12 = arith.constant 0 : index
    %16 = vector.load %arg6[%c0_11, %c0_12] : memref<8x128xf32, #tpu.memory_space<vmem>>, vector<8x128xf32>
    tpu.vector_store %arg6[%c0_11, %c0_12], %15 {strides = array<i32>} : memref<8x128xf32, #tpu.memory_space<vmem>>, vector<8x128xf32>,
    return
  }
  func.func @transform_0(%arg0: i32) -> (i32, i32) {
    %c0_i32 = arith.constant 0 : i32
    %c0_i32_0 = arith.constant 0 : i32
    return %arg0, %c0_i32 : i32, i32
  }
  func.func @transform_1(%arg0: i32) -> (i32, i32) {
    %c0_i32 = arith.constant 0 : i32
    %c0_i32_0 = arith.constant 0 : i32
    %c0_i32_1 = arith.constant 0 : i32
    return %c0_i32, %c0_i32_0 : i32, i32
  }
  func.func @transform_2(%arg0: i32) -> (i32, i32) {
    %c0_i32 = arith.constant 0 : i32
    %c0_i32_0 = arith.constant 0 : i32
    %c0_i32_1 = arith.constant 0 : i32
    return %c0_i32, %c0_i32_0 : i32, i32
  }
  func.func @transform_3(%arg0: i32) -> (i32, i32) {
    %c0_i32 = arith.constant 0 : i32
    %c0_i32_0 = arith.constant 0 : i32
    %c0_i32_1 = arith.constant 0 : i32
    return %c0_i32, %c0_i32_0 : i32, i32
  }
  func.func @transform_4(%arg0: i32) -> (i32, i32) {
    %c0_i32 = arith.constant 0 : i32
    %c0_i32_0 = arith.constant 0 : i32
    %c0_i32_1 = arith.constant 0 : i32
    return %c0_i32, %c0_i32_0 : i32, i32
  }
  func.func @transform_5(%arg0: i32) -> (i32, i32) {
    %c0_i32 = arith.constant 0 : i32
    %c0_i32_0 = arith.constant 0 : i32
    return %arg0, %c0_i32 : i32, i32
  }
}

</mosaic_0001>

<llo_original>
// kernel: tpu_custom_call.1
$region0: #{tpu_custom_call.1}
  #allocation0 [shape = 'u32[]', space=smem, size = 0x4, offset = 0x4, fixed_abs, tag = 'smem constant byte address 0x4 - core index']
  #allocation1 [shape = 'u32[144,128]{1,0:T(1,128)}', space=vmem, size = 0x12000, scoped, tag = 'internal scratch']
  %s0 = inlined_call_operand.hbm [shape: f32[8,24], index: 0, kind: input, shape index: {}]
  %s1 = inlined_call_operand.hbm [shape: bf16[24,256], index: 1, kind: input, shape index: {}]
  %s2 = inlined_call_operand.vmem [shape: f32[1,256], index: 2, kind: input, shape index: {}]
  %s3 = inlined_call_operand.hbm [shape: bf16[256,128], index: 3, kind: input, shape index: {}]
  %s4 = inlined_call_operand.vmem [shape: f32[1,128], index: 4, kind: input, shape index: {}]
  %s5 = inlined_call_operand.hbm [shape: f32[8,128], index: 5, kind: output, shape index: {}]
  %s6 = sld [smem:[#allocation0]]
  $region42: #{tpu_custom_call.1} parent=0
    _
  %s8 = ssub.s32 1, %s6
  %s9 = scalar_select 0, %s8, %s6
  $region1: #{tpu_custom_call.1} parent=0
    #allocation2 [shape = 'u8[4096]{0}', space=vmem, size = 0x1000, scoped, tag = 'input window, operand 0, single buffered']
    #allocation3 [shape = 's32[1]{0}', space=sflag, size = 0x4, scoped, tag = 'scoped memory for tpu_custom_call.1']
    #allocation4 [shape = 's32[1]{0}', space=sflag, size = 0x4, scoped, tag = 'scoped memory for tpu_custom_call.1']
    #allocation5 [shape = 'u8[12288]{0}', space=vmem, size = 0x3000, scoped, tag = 'input window, operand 1, single buffered']
    #allocation6 [shape = 's32[1]{0}', space=sflag, size = 0x4, scoped, tag = 'scoped memory for tpu_custom_call.1']
    #allocation7 [shape = 'u8[65536]{0}', space=vmem, size = 0x10000, scoped, tag = 'input window, operand 3, single buffered']
    #allocation8 [shape = 'u8[4096]{0}', space=vmem, size = 0x1000, scoped, tag = 'output window, operand 0, single buffered']
    %10 = vsyncpa [#allocation3], 0
    %11 = vsyncpa [#allocation6], 0
    %12 = vsyncpa [#allocation4], 0
    // Predicated region
    $region2: #{tpu_custom_call.1} parent=1 // pred_check
      _
    $region3: #{tpu_custom_call.1} parent=1 // pred_check_branch
      %14 = sbr.rel (0) target = $region5
    $region4: #{tpu_custom_call.1} parent=1 // pred_region
      %s16 = ssub.s32 128, 128
      %17 = vsyncadd [#allocation3], %s16
      %s19 = sshll.u32 [#allocation2], 4
      %s20 = int_to_ptr.vmem [resolvable:$true] %s19
      %22 = dma.hbm_to_vmem [thread:$0]  %s0, 128, %s20, [#allocation3]
    $region5: #{tpu_custom_call.1} parent=1 // pred_fallthru
      _
    // Predicated region
    $region6: #{tpu_custom_call.1} parent=1 // pred_check
      _
    $region7: #{tpu_custom_call.1} parent=1 // pred_check_branch
      %24 = sbr.rel (0) target = $region9
    $region8: #{tpu_custom_call.1} parent=1 // pred_region
      %s26 = ssub.s32 384, 384
      %27 = vsyncadd [#allocation6], %s26
      %s28 = sshll.u32 [#allocation5], 4
      %s29 = int_to_ptr.vmem [resolvable:$true] %s28
      %34 = dma.hbm_to_vmem [thread:$0]  %s1, 384, %s29, [#allocation6], 128, 128, 8
    $region9: #{tpu_custom_call.1} parent=1 // pred_fallthru
      _
    // Predicated region
    $region10: #{tpu_custom_call.1} parent=1 // pred_check
      _
    $region11: #{tpu_custom_call.1} parent=1 // pred_check_branch
      %36 = sbr.rel (0) target = $region13
    $region12: #{tpu_custom_call.1} parent=1 // pred_region
      _
    $region13: #{tpu_custom_call.1} parent=1 // pred_fallthru
      _
    // Predicated region
    $region14: #{tpu_custom_call.1} parent=1 // pred_check
      _
    $region15: #{tpu_custom_call.1} parent=1 // pred_check_branch
      %38 = sbr.rel (0) target = $region17
    $region16: #{tpu_custom_call.1} parent=1 // pred_region
      %s40 = ssub.s32 2048, 2048
      %41 = vsyncadd [#allocation6], %s40
      %s42 = sshll.u32 [#allocation7], 4
      %s43 = int_to_ptr.vmem [resolvable:$true] %s42
      %48 = dma.hbm_to_vmem [thread:$0]  %s3, 2048, %s43, [#allocation6], 64, 64, 4
    $region17: #{tpu_custom_call.1} parent=1 // pred_fallthru
      _
    // Predicated region
    $region18: #{tpu_custom_call.1} parent=1 // pred_check
      _
    $region19: #{tpu_custom_call.1} parent=1 // pred_check_branch
      %50 = sbr.rel (0) target = $region21
    $region20: #{tpu_custom_call.1} parent=1 // pred_region
      _
    $region21: #{tpu_custom_call.1} parent=1 // pred_fallthru
      _
    // Predicated region
    $region22: #{tpu_custom_call.1} parent=1 // pred_check
      _
    $region23: #{tpu_custom_call.1} parent=1 // pred_check_branch
      %52 = sbr.rel (0) target = $region25
    $region24: #{tpu_custom_call.1} parent=1 // pred_region
      %53 = dma.done [#allocation3], 128
    $region25: #{tpu_custom_call.1} parent=1 // pred_fallthru
      _
    // Predicated region
    $region26: #{tpu_custom_call.1} parent=1 // pred_check
      _
    $region27: #{tpu_custom_call.1} parent=1 // pred_check_branch
      %55 = sbr.rel (0) target = $region29
    $region28: #{tpu_custom_call.1} parent=1 // pred_region
      %56 = dma.done [#allocation6], 384
    $region29: #{tpu_custom_call.1} parent=1 // pred_fallthru
      _
    // Predicated region
    $region30: #{tpu_custom_call.1} parent=1 // pred_check
      _
    $region31: #{tpu_custom_call.1} parent=1 // pred_check_branch
      %58 = sbr.rel (0) target = $region33
    $region32: #{tpu_custom_call.1} parent=1 // pred_region
      %59 = dma.done [#allocation6], 2048
    $region33: #{tpu_custom_call.1} parent=1 // pred_fallthru
      _
    %v61 = vld [vmem:[#allocation2] sm:$0xff]
    %v62 = vpack.c.bf16 %v61, %v61
    %v63 = vld [vmem:[#allocation5] sm:$0xff]
    %v64 = vld [vmem:[#allocation5 + $0x8] sm:$0xff]
    %v65 = vld [vmem:[#allocation5 + $0x10] sm:$0xff]
    %v66 = vld [vmem:[%s2] sm:$0x3]
    %v68 = vlaneseq
    %v69 = vshrl.u32 %v68, 7
    %v70 = vsub.s32 0, %v69
    %v71 = vrot.slane %v66, %v70
    %v72 = vlaneseq
    %v73 = vshrl.u32 %v72, 7
    %v74 = vsub.s32 1, %v73
    %v75 = vrot.slane %v66, %v74
    %v81 = vunpack.c.l.b16 %v63
    %v82 = vunpack.c.h.b16 %v63
    %v83 = vunpack.c.l.b16 %v64
    %v84 = vunpack.c.h.b16 %v64
    %v85 = vunpack.c.l.b16 %v65
    %v86 = vunpack.c.h.b16 %v65
    %v87 = vpack.c.b16 %v83, %v81
    %v88 = vpack.c.b16 %v84, %v82
    %v89 = vpack.c.b16 %v85, %v85
    %v90 = vpack.c.b16 %v86, %v86
    %vm93 = vcmask 195584
    %v95 = vsel %vm93, %v62, 0
    %vm97 = vcmask 1043456
    %v99 = vsel %vm97, %v89, 0
    %v102 = vsel %vm97, %v90, 0
    %104 = vmatprep.subr.bf16.mxu0 %v88
    %105 = vmatpush1.bf16.msra.mxu0 %v87
    %106 = vmatprep.subr.bf16.mxu0 %v102
    %107 = vmatpush1.bf16.msra.mxu0 %v99
    %108 = vmatprep.subr.bf16.mxu0 0
    %109 = vmatpush1.bf16.msra.mxu0 0
    %110 = vmatprep.subr.bf16.mxu0 0
    %111 = vmatpush1.bf16.msra.mxu0 0
    %112 = vmatprep.subr.bf16.mxu0 0
    %113 = vmatpush1.bf16.msra.mxu0 0
    %114 = vmatprep.subr.bf16.mxu0 0
    %115 = vmatpush1.bf16.msra.mxu0 0
    %116 = vmatprep.subr.bf16.mxu0 0
    %117 = vmatpush1.bf16.msra.mxu0 0
    %118 = vmatprep.subr.bf16.mxu0 0
    %119 = vmatpush1.bf16.msra.mxu0 0
    %120 = vmatprep.subr.bf16.mxu0 0
    %121 = vmatpush1.bf16.msra.mxu0 0
    %122 = vmatprep.subr.bf16.mxu0 0
    %123 = vmatpush1.bf16.msra.mxu0 0
    %124 = vmatprep.subr.bf16.mxu0 0
    %125 = vmatpush1.bf16.msra.mxu0 0
    %126 = vmatprep.subr.bf16.mxu0 0
    %127 = vmatpush1.bf16.msra.mxu0 0
    %128 = vmatprep.subr.bf16.mxu0 0
    %129 = vmatpush1.bf16.msra.mxu0 0
    %130 = vmatprep.subr.bf16.mxu0 0
    %131 = vmatpush1.bf16.msra.mxu0 0
    %132 = vmatprep.subr.bf16.mxu0 0
    %133 = vmatpush1.bf16.msra.mxu0 0
    %134 = vmatprep.subr.bf16.mxu0 0
    %135 = vmatpush1.bf16.msra.mxu0 0
    %136 = vmatprep.mubr.bf16.mxu0 0
    %137 = vmatmul.mubr.bf16.gmra.mrb[0].mxu0 %v95
    %v138 = vpop.f32.mrb[0].mxu0
    %v139 = vadd.f32 %v71, %v138
    %v140 = vpop.f32.mrb[0].mxu0
    %v141 = vadd.f32 %v75, %v140
    %v142 = vpop.f32.mrb[0].mxu0
    %v143 = vpop.f32.mrb[0].mxu0
    %144 = vdwg.mxu0
    %v145 = vmax.f32 %v139, 0.0
    %v146 = vmax.f32 %v141, 0.0
    %v147 = vpack.c.bf16 %v145, %v145
    %v148 = vpack.c.bf16 %v146, %v146
    %v149 = vld [vmem:[#allocation7] sm:$0xf]
    %v150 = vld [vmem:[#allocation7 + $0x4] sm:$0xf]
    %v151 = vld [vmem:[#allocation7 + $0x8] sm:$0xf]
    %v152 = vld [vmem:[#allocation7 + $0xc] sm:$0xf]
    %v153 = vld [vmem:[#allocation7 + $0x10] sm:$0xf]
    %v154 = vld [vmem:[#allocation7 + $0x14] sm:$0xf]
    %v155 = vld [vmem:[#allocation7 + $0x18] sm:$0xf]
    %v156 = vld [vmem:[#allocation7 + $0x1c] sm:$0xf]
    %v157 = vld [vmem:[#allocation7 + $0x20] sm:$0xf]
    %v158 = vld [vmem:[#allocation7 + $0x24] sm:$0xf]
    %v159 = vld [vmem:[#allocation7 + $0x28] sm:$0xf]
    %v160 = vld [vmem:[#allocation7 + $0x2c] sm:$0xf]
    %v161 = vld [vmem:[#allocation7 + $0x30] sm:$0xf]
    %v162 = vld [vmem:[#allocation7 + $0x34] sm:$0xf]
    %v163 = vld [vmem:[#allocation7 + $0x38] sm:$0xf]
    %v164 = vld [vmem:[#allocation7 + $0x3c] sm:$0xf]
    %v165 = vld [vmem:[#allocation7 + $0x40] sm:$0xf]
    %v166 = vld [vmem:[#allocation7 + $0x44] sm:$0xf]
    %v167 = vld [vmem:[#allocation7 + $0x48] sm:$0xf]
    %v168 = vld [vmem:[#allocation7 + $0x4c] sm:$0xf]
    %v169 = vld [vmem:[#allocation7 + $0x50] sm:$0xf]
    %v170 = vld [vmem:[#allocation7 + $0x54] sm:$0xf]
    %v171 = vld [vmem:[#allocation7 + $0x58] sm:$0xf]
    %v172 = vld [vmem:[#allocation7 + $0x5c] sm:$0xf]
    %v173 = vld [vmem:[#allocation7 + $0x60] sm:$0xf]
    %v174 = vld [vmem:[#allocation7 + $0x64] sm:$0xf]
    %v175 = vld [vmem:[#allocation7 + $0x68] sm:$0xf]
    %v176 = vld [vmem:[#allocation7 + $0x6c] sm:$0xf]
    %v177 = vld [vmem:[#allocation7 + $0x70] sm:$0xf]
    %v178 = vld [vmem:[#allocation7 + $0x74] sm:$0xf]
    %v179 = vld [vmem:[#allocation7 + $0x78] sm:$0xf]
    %v180 = vld [vmem:[#allocation7 + $0x7c] sm:$0xf]
    %v181 = vld [vmem:[%s4] sm:$0x1]
    %v183 = vlaneseq
    %v184 = vshrl.u32 %v183, 7
    %v185 = vsub.s32 0, %v184
    %v186 = vrot.slane %v181, %v185
    %v220 = vunpack.c.l.b16 %v149
    %v221 = vunpack.c.l.b16 %v150
    %v222 = vunpack.c.l.b16 %v151
    %v223 = vunpack.c.l.b16 %v152
    %v224 = vunpack.c.l.b16 %v153
    %v225 = vunpack.c.l.b16 %v154
    %v226 = vunpack.c.l.b16 %v155
    %v227 = vunpack.c.l.b16 %v156
    %v228 = vunpack.c.l.b16 %v157
    %v229 = vunpack.c.l.b16 %v158
    %v230 = vunpack.c.l.b16 %v159
    %v231 = vunpack.c.l.b16 %v160
    %v232 = vunpack.c.l.b16 %v161
    %v233 = vunpack.c.l.b16 %v162
    %v234 = vunpack.c.l.b16 %v163
    %v235 = vunpack.c.l.b16 %v164
    %v236 = vunpack.c.l.b16 %v165
    %v237 = vunpack.c.l.b16 %v166
    %v238 = vunpack.c.l.b16 %v167
    %v239 = vunpack.c.l.b16 %v168
    %v240 = vunpack.c.l.b16 %v169
    %v241 = vunpack.c.l.b16 %v170
    %v242 = vunpack.c.l.b16 %v171
    %v243 = vunpack.c.l.b16 %v172
    %v244 = vunpack.c.l.b16 %v173
    %v245 = vunpack.c.l.b16 %v174
    %v246 = vunpack.c.l.b16 %v175
    %v247 = vunpack.c.l.b16 %v176
    %v248 = vunpack.c.l.b16 %v177
    %v249 = vunpack.c.l.b16 %v178
    %v250 = vunpack.c.l.b16 %v179
    %v251 = vunpack.c.l.b16 %v180
    %v252 = vpack.c.b16 %v221, %v220
    %v253 = vpack.c.b16 %v223, %v222
    %v254 = vpack.c.b16 %v225, %v224
    %v255 = vpack.c.b16 %v227, %v226
    %v256 = vpack.c.b16 %v229, %v228
    %v257 = vpack.c.b16 %v231, %v230
    %v258 = vpack.c.b16 %v233, %v232
    %v259 = vpack.c.b16 %v235, %v234
    %v260 = vpack.c.b16 %v237, %v236
    %v261 = vpack.c.b16 %v239, %v238
    %v262 = vpack.c.b16 %v241, %v240
    %v263 = vpack.c.b16 %v243, %v242
    %v264 = vpack.c.b16 %v245, %v244
    %v265 = vpack.c.b16 %v247, %v246
    %v266 = vpack.c.b16 %v249, %v248
    %v267 = vpack.c.b16 %v251, %v250
    %284 = vmatprep.subr.bf16.mxu0 0
    %285 = vmatpush1.bf16.msra.mxu0 %v252
    %286 = vmatprep.subr.bf16.mxu0 0
    %287 = vmatpush1.bf16.msra.mxu0 %v253
    %288 = vmatprep.subr.bf16.mxu0 0
    %289 = vmatpush1.bf16.msra.mxu0 %v254
    %290 = vmatprep.subr.bf16.mxu0 0
    %291 = vmatpush1.bf16.msra.mxu0 %v255
    %292 = vmatprep.subr.bf16.mxu0 0
    %293 = vmatpush1.bf16.msra.mxu0 %v256
    %294 = vmatprep.subr.bf16.mxu0 0
    %295 = vmatpush1.bf16.msra.mxu0 %v257
    %296 = vmatprep.subr.bf16.mxu0 0
    %297 = vmatpush1.bf16.msra.mxu0 %v258
    %298 = vmatprep.subr.bf16.mxu0 0
    %299 = vmatpush1.bf16.msra.mxu0 %v259
    %300 = vmatprep.subr.bf16.mxu0 0
    %301 = vmatpush1.bf16.msra.mxu0 %v260
    %302 = vmatprep.subr.bf16.mxu0 0
    %303 = vmatpush1.bf16.msra.mxu0 %v261
    %304 = vmatprep.subr.bf16.mxu0 0
    %305 = vmatpush1.bf16.msra.mxu0 %v262
    %306 = vmatprep.subr.bf16.mxu0 0
    %307 = vmatpush1.bf16.msra.mxu0 %v263
    %308 = vmatprep.subr.bf16.mxu0 0
    %309 = vmatpush1.bf16.msra.mxu0 %v264
    %310 = vmatprep.subr.bf16.mxu0 0
    %311 = vmatpush1.bf16.msra.mxu0 %v265
    %312 = vmatprep.subr.bf16.mxu0 0
    %313 = vmatpush1.bf16.msra.mxu0 %v266
    %314 = vmatprep.subr.bf16.mxu0 0
    %315 = vmatpush1.bf16.msra.mxu0 %v267
    %316 = vmatprep.mubr.bf16.mxu0 %v148
    %317 = vmatmul.mubr.bf16.gmra.mrb[0].mxu0 %v147
    %v318 = vpop.f32.mrb[0].mxu0
    %v319 = vadd.f32 %v186, %v318
    %v320 = vpop.f32.mrb[0].mxu0
    %v321 = vpop.f32.mrb[0].mxu0
    %v322 = vpop.f32.mrb[0].mxu0
    %323 = vdwg.mxu0
    %v324 = vtanh.pop %v319
    %325 = vst [vmem:[#allocation8] sm:$0xff] %v324
    // Predicated region
    $region34: #{tpu_custom_call.1} parent=1 // pred_check
      _
    $region35: #{tpu_custom_call.1} parent=1 // pred_check_branch
      %327 = sbr.rel (0) target = $region37
    $region36: #{tpu_custom_call.1} parent=1 // pred_region
      %s329 = ssub.s32 128, 128
      %330 = vsyncadd [#allocation4], %s329
      %s332 = sshll.u32 [#allocation8], 4
      %s333 = int_to_ptr.vmem [resolvable:$true] %s332
      %335 = dma.vmem_to_hbm [thread:$0]  %s333, 128, %s5, [#allocation4]
    $region37: #{tpu_custom_call.1} parent=1 // pred_fallthru
      _
    // Predicated region
    $region38: #{tpu_custom_call.1} parent=1 // pred_check
      _
    $region39: #{tpu_custom_call.1} parent=1 // pred_check_branch
      %337 = sbr.rel (0) target = $region41
    $region40: #{tpu_custom_call.1} parent=1 // pred_region
      %338 = dma.done [#allocation4], 128
    $region41: #{tpu_custom_call.1} parent=1 // pred_fallthru
      _
    %339 = vsyncpa [#allocation3], 1
    %340 = vsyncpa [#allocation6], 1
    %341 = vsyncpa [#allocation4], 1

</llo_original>
